<compile_context>
chip_gen: v6e
topology: v6e:2x2x1
jax: 0.10.0
libtpu: 0.0.40
codegen_flags: <defaults>
</compile_context>

<pallas_src>
import functools

import jax
import jax.numpy as jnp
from jax.experimental import pallas as pl
from jax.experimental.pallas import tpu as pltpu


# ---------------------------------------------------------------------------
# Kernels
# ---------------------------------------------------------------------------

def _rim_step_kernel(xh_ref, wcat_ref, b_ref, mexp_ref, out_ref, *, rdin: int):
    # xh_ref:   (bm, R*(Din+Dh))   concatenated [x | h_prev], lane-dense
    # wcat_ref: (R*(Din+Dh), R*Dh) stacked block-diagonal [W_ih_blk ; W_hh_blk]
    # b_ref:    (1, R*Dh)          bias
    # mexp_ref: (bm, R*Dh)         mask pre-expanded to lane width
    # out_ref:  (bm, R*Dh)         new (masked) hidden state
    xh = xh_ref[...]
    pre = jnp.dot(xh, wcat_ref[...], preferred_element_type=jnp.float32) + b_ref[...]
    h_new = jnp.tanh(pre)
    h_old = xh[:, rdin:]
    m = mexp_ref[...]
    out_ref[...] = (h_old + m * (h_new - h_old)).astype(out_ref.dtype)


def _rim_seq_kernel(x_ref, h0_ref, wcat_ref, b_ref, mexp_ref, out_ref, xh_scratch,
                    *, rdin: int, rdh: int):
    # One grid step per timestep t.  Weights are resident (constant index_map); the
    # hidden state lives in the h-half of the xh staging scratch across grid steps.
    t = pl.program_id(0)

    @pl.when(t == 0)
    def _():
        xh_scratch[:, pl.ds(rdin, rdh)] = h0_ref[...]

    xh_scratch[:, pl.ds(0, rdin)] = x_ref[0]
    xh = xh_scratch[...]
    pre = jnp.dot(xh, wcat_ref[...], preferred_element_type=jnp.float32) + b_ref[...]
    h_new = jnp.tanh(pre)
    h_old = xh[:, rdin:]
    h_out = h_old + mexp_ref[0] * (h_new - h_old)
    xh_scratch[:, pl.ds(rdin, rdh)] = h_out
    out_ref[0] = h_out.astype(out_ref.dtype)


# ---------------------------------------------------------------------------
# pallas_call wrappers
# ---------------------------------------------------------------------------

def _round_up(n: int, m: int) -> int:
    return ((n + m - 1) // m) * m


def _batch_tile(bp: int) -> int:
    for cand in (256, 128, 64, 32, 16, 8):
        if bp % cand == 0:
            return cand
    return bp


def rim_cell_step_pallas(xh, w_cat, b_blk, mask_exp, *, rdin: int, rdh: int):
    """Single-step forward.  xh: (Bp, rdin+rdh), mask_exp: (Bp, rdh); Bp % 8 == 0."""
    bp, k = xh.shape
    bm = _batch_tile(bp)
    kernel = functools.partial(_rim_step_kernel, rdin=rdin)
    return pl.pallas_call(
        kernel,
        out_shape=jax.ShapeDtypeStruct((bp, rdh), jnp.float32),
        grid_spec=pltpu.PrefetchScalarGridSpec(
            num_scalar_prefetch=0,
            grid=(bp // bm,),
            in_specs=[
                pl.BlockSpec((bm, k), lambda i: (i, 0)),
                pl.BlockSpec(w_cat.shape, lambda i: (0, 0)),
                pl.BlockSpec((1, rdh), lambda i: (0, 0)),
                pl.BlockSpec((bm, rdh), lambda i: (i, 0)),
            ],
            out_specs=pl.BlockSpec((bm, rdh), lambda i: (i, 0)),
        ),
        compiler_params=pltpu.CompilerParams(dimension_semantics=("parallel",)),
    )(xh, w_cat, b_blk, mask_exp)


def rim_cell_seq_pallas(x_seq, h0, w_cat, b_blk, mask_seq_exp, *, rdin: int, rdh: int):
    """Fused sequence forward.  x_seq: (T, Bp, rdin), h0: (Bp, rdh),
    mask_seq_exp: (T, Bp, rdh).  Returns (T, Bp, rdh) hidden states."""
    t_len, bp, _ = x_seq.shape
    kernel = functools.partial(_rim_seq_kernel, rdin=rdin, rdh=rdh)
    return pl.pallas_call(
        kernel,
        out_shape=jax.ShapeDtypeStruct((t_len, bp, rdh), jnp.float32),
        grid_spec=pltpu.PrefetchScalarGridSpec(
            num_scalar_prefetch=0,
            grid=(t_len,),
            in_specs=[
                pl.BlockSpec((1, bp, rdin), lambda t: (t, 0, 0)),
                pl.BlockSpec((bp, rdh), lambda t: (0, 0)),
                pl.BlockSpec(w_cat.shape, lambda t: (0, 0)),
                pl.BlockSpec((1, rdh), lambda t: (0, 0)),
                pl.BlockSpec((1, bp, rdh), lambda t: (t, 0, 0)),
            ],
            out_specs=pl.BlockSpec((1, bp, rdh), lambda t: (t, 0, 0)),
            scratch_shapes=[pltpu.VMEM((bp, rdin + rdh), jnp.float32)],
        ),
        compiler_params=pltpu.CompilerParams(dimension_semantics=("arbitrary",)),
    )(x_seq, h0, w_cat, b_blk, mask_seq_exp)


# ---------------------------------------------------------------------------
# Concrete Cell
# ---------------------------------------------------------------------------

def _block_diag(blocks):
    """(R, din, dout) per-rim blocks -> (R*din, R*dout) block-diagonal matrix."""
    R, din, dout = blocks.shape
    eye = jnp.eye(R, dtype=blocks.dtype)
    return jnp.einsum("rij,rs->risj", blocks, eye).reshape(R * din, R * dout)


class PallasRIMCell:
    """Concrete `Cell`: a collection of `num_rims` independent RNN blocks of size d_hid."""

    def __init__(self, d_hidden: int, num_rims: int, d_in: int, key):
        self.d_hid = d_hidden
        self.num_rims = num_rims
        self.d_in = d_in
        k1, k2, k3 = jax.random.split(key, 3)
        scale = 1.0 / jnp.sqrt(jnp.float32(d_hidden))
        # Per-RIM parameters (one block per RIM).
        self.w_ih = jax.random.normal(k1, (num_rims, d_in, d_hidden), jnp.float32) * scale
        self.w_hh = jax.random.normal(k2, (num_rims, d_hidden, d_hidden), jnp.float32) * scale
        self.b = jax.random.normal(k3, (num_rims, d_hidden), jnp.float32) * scale
        # Folded (block-diagonal, vertically stacked) parameters used by the kernels.
        self.w_cat = None
        self.b_blk = None
        self.blockify_params()

    # --- base-class concrete methods -------------------------------------
    def get_hidden_state(self, states):
        hx = states[0] if isinstance(states, (tuple, list)) else states
        return hx.reshape(-1, self.num_rims, self.d_hid)

    def set_hidden_state(self, states, hx_new):
        # TODO(synk): single-tensor state container; extra states (e.g. LSTM cell
        #             state) would need to be threaded through here.
        return hx_new.reshape(-1, self.num_rims, self.d_hid)

    def reshape_states(self, states):
        return self.get_hidden_state(states)

    def blockify_params(self):
        """Precompute stacked block-diagonal weights so the kernel is ONE K=R*(Din+Dh)
        lane-dense contraction (x and h concatenated along lanes by the wrapper)."""
        w_ih_blk = _block_diag(self.w_ih)                                # (R*Din, R*Dh)
        w_hh_blk = _block_diag(self.w_hh)                                # (R*Dh,  R*Dh)
        self.w_cat = jnp.concatenate([w_ih_blk, w_hh_blk], axis=0)      # (R*(Din+Dh), R*Dh)
        self.b_blk = self.b.reshape(1, self.num_rims * self.d_hid)      # (1, R*Dh)
        return None

    def init_states(self, bsz):
        return jnp.zeros((bsz, self.num_rims, self.d_hid), jnp.float32)

    def apply_mask(self, old_states, new_states, mask):
        m = mask[:, :, None].astype(jnp.float32)
        return m * new_states + (1.0 - m) * old_states

    # --- shape plumbing ----------------------------------------------------
    def _expand_mask(self, mask):
        # (..., R) -> (..., R*Dh), matching the row-major lane layout of h.
        shape = mask.shape + (self.d_hid,)
        return jnp.broadcast_to(mask.astype(jnp.float32)[..., None], shape).reshape(
            mask.shape[:-1] + (self.num_rims * self.d_hid,))

    # --- single-step forward (Pallas) --------------------------------------
    def forward(self, x, states, mask):
        """
        x:      [B, num_rims, d_in]     canonical input
        states: [B, num_rims, d_hid]    previous hidden state (canonical form)
        mask:   [B, num_rims]           per-RIM activation mask
        returns [B, num_rims, d_hid]
        """
        hx = self.get_hidden_state(states)
        B = hx.shape[0]
        rdin = self.num_rims * self.d_in
        rdh = self.num_rims * self.d_hid
        bp = _round_up(max(B, 8), 8)                      # fill sublanes

        # [B,R,D] -> [B,R*D] are free row-major reshapes; concat feeds the fused dot.
        xh = jnp.concatenate([x.reshape(B, rdin), hx.reshape(B, rdh)], axis=1)
        m_exp = self._expand_mask(mask)
        if bp != B:
            xh = jnp.pad(xh, ((0, bp - B), (0, 0)))
            m_exp = jnp.pad(m_exp, ((0, bp - B), (0, 0)))

        out2 = rim_cell_step_pallas(xh, self.w_cat, self.b_blk, m_exp,
                                    rdin=rdin, rdh=rdh)
        hx_new = out2[:B].reshape(B, self.num_rims, self.d_hid)
        return self.set_hidden_state(states, hx_new)

    # --- fused sequence forward (Pallas, grid over T) -----------------------
    def forward_sequence(self, x_seq, states, mask_seq):
        """
        x_seq:    [T, B, num_rims, d_in]
        states:   [B, num_rims, d_hid]   initial hidden state
        mask_seq: [T, B, num_rims]
        returns   [T, B, num_rims, d_hid]   hidden state after every step
        """
        hx0 = self.get_hidden_state(states)
        T, B = x_seq.shape[0], hx0.shape[0]
        rdin = self.num_rims * self.d_in
        rdh = self.num_rims * self.d_hid
        bp = _round_up(max(B, 8), 8)

        x2 = x_seq.reshape(T, B, rdin)
        h0 = hx0.reshape(B, rdh).astype(jnp.float32)
        m2 = self._expand_mask(mask_seq)                  # (T, B, rdh)
        if bp != B:
            x2 = jnp.pad(x2, ((0, 0), (0, bp - B), (0, 0)))
            h0 = jnp.pad(h0, ((0, bp - B), (0, 0)))
            m2 = jnp.pad(m2, ((0, 0), (0, bp - B), (0, 0)))

        out = rim_cell_seq_pallas(x2, h0, self.w_cat, self.b_blk, m2,
                                  rdin=rdin, rdh=rdh)
        return out[:, :B].reshape(T, B, self.num_rims, self.d_hid)

    # --- pure-JAX references (verification only) ----------------------------
    def forward_ref(self, x, states, mask):
        hx = self.get_hidden_state(states)
        pre = (jnp.einsum("brd,rde->bre", x, self.w_ih)
               + jnp.einsum("brd,rde->bre", hx, self.w_hh)
               + self.b[None, :, :])
        return self.apply_mask(hx, jnp.tanh(pre), mask)

    def forward_sequence_ref(self, x_seq, states, mask_seq):
        h = self.get_hidden_state(states)
        outs = []
        for t in range(x_seq.shape[0]):
            h = self.forward_ref(x_seq[t], h, mask_seq[t])
            outs.append(h)
        return jnp.stack(outs, axis=0)


# ---------------------------------------------------------------------------
# Smoke test
# ---------------------------------------------------------------------------

if __name__ == "__main__":
    B, R, D_IN, D_HID, T = 2, 4, 32, 32, 6   # folded lane widths: R*D_IN=128, R*D_HID=128

    key = jax.random.PRNGKey(0)
    k_param, k_x, k_h, k_m, k_xs, k_ms = jax.random.split(key, 6)

    cell = PallasRIMCell(d_hidden=D_HID, num_rims=R, d_in=D_IN, key=k_param)

    # --- single-step ---
    x = jax.random.normal(k_x, (B, R, D_IN), jnp.float32)
    hx0 = jax.random.normal(k_h, (B, R, D_HID), jnp.float32)
    mask = (jax.random.uniform(k_m, (B, R)) > 0.5).astype(jnp.float32)

    out = jax.block_until_ready(cell.forward(x, hx0, mask))
    ref = cell.forward_ref(x, hx0, mask)
    assert out.shape == (B, R, D_HID)
    assert jnp.allclose(out, ref, atol=1e-5, rtol=1e-5)

    # --- fused sequence (grid over T, resident weights, VMEM-carried hidden state) ---
    x_seq = jax.random.normal(k_xs, (T, B, R, D_IN), jnp.float32)
    mask_seq = (jax.random.uniform(k_ms, (T, B, R)) > 0.5).astype(jnp.float32)

    out_seq = jax.block_until_ready(cell.forward_sequence(x_seq, hx0, mask_seq))
    ref_seq = cell.forward_sequence_ref(x_seq, hx0, mask_seq)
    assert out_seq.shape == (T, B, R, D_HID)
    assert jnp.allclose(out_seq, ref_seq, atol=1e-4, rtol=1e-4)

    print("KERNEL_OK")
</pallas_src>

<mosaic_0001>
module attributes {stable_mosaic.version = 11 : i64} {
  func.func @_rim_step_kernel(%arg0: i32, %arg1: memref<8x256xf32, #tpu.memory_space<vmem>>, %arg2: memref<256x128xf32, #tpu.memory_space<vmem>>, %arg3: memref<1x128xf32, #tpu.memory_space<vmem>>, %arg4: memref<8x128xf32, #tpu.memory_space<vmem>>, %arg5: memref<8x128xf32, #tpu.memory_space<vmem>>) attributes {dimension_semantics = [#tpu.dimension_semantics<parallel>], iteration_bounds = array<i64: 1>, scalar_prefetch = 0 : i64, scratch_operands = 0 : i64, tpu.core_type = #tpu.core_type<tc>, window_params = [{transform_indices = @transform_0, window_bounds = array<i64: 8, 256>}, {pipeline_mode = #tpu.pipeline_mode<synchronous>, transform_indices = @transform_1, window_bounds = array<i64: 256, 128>}, {pipeline_mode = #tpu.pipeline_mode<synchronous>, transform_indices = @transform_2, window_bounds = array<i64: 1, 128>}, {transform_indices = @transform_3, window_bounds = array<i64: 8, 128>}, {transform_indices = @transform_4, window_bounds = array<i64: 8, 128>}]} {
    %c0 = arith.constant 0 : index
    %c0_0 = arith.constant 0 : index
    %0 = vector.load %arg1[%c0, %c0_0] : memref<8x256xf32, #tpu.memory_space<vmem>>, vector<8x256xf32>
    %c0_1 = arith.constant 0 : index
    %c0_2 = arith.constant 0 : index
    %1 = vector.load %arg2[%c0_1, %c0_2] : memref<256x128xf32, #tpu.memory_space<vmem>>, vector<256x128xf32>
    %cst = arith.constant dense<0.000000e+00> : vector<8x128xf32>
    %2 = tpu.matmul %0, %1, %cst {dimension_numbers = #tpu.dot_dimension_numbers<[1], [0], [0], [1], [0, 0, 1, 1], [], []>} : vector<8x256xf32>, vector<256x128xf32>, vector<8x128xf32> -> vector<8x128xf32>
    %c0_3 = arith.constant 0 : index
    %c0_4 = arith.constant 0 : index
    %3 = vector.load %arg3[%c0_3, %c0_4] : memref<1x128xf32, #tpu.memory_space<vmem>>, vector<1x128xf32>
    %4 = vector.broadcast %3 : vector<1x128xf32> to vector<8x128xf32>
    %5 = arith.addf %2, %4 : vector<8x128xf32>
    %6 = math.tanh %5 : vector<8x128xf32>
    %7 = vector.extract_strided_slice %0 {offsets = [0, 128], sizes = [8, 128], strides = [1, 1]} : vector<8x256xf32> to vector<8x128xf32>
    %c0_5 = arith.constant 0 : index
    %c0_6 = arith.constant 0 : index
    %8 = vector.load %arg4[%c0_5, %c0_6] : memref<8x128xf32, #tpu.memory_space<vmem>>, vector<8x128xf32>
    %9 = arith.subf %6, %7 : vector<8x128xf32>
    %10 = arith.mulf %8, %9 : vector<8x128xf32>
    %11 = arith.addf %7, %10 : vector<8x128xf32>
    %c0_7 = arith.constant 0 : index
    %c0_8 = arith.constant 0 : index
    %12 = vector.load %arg5[%c0_7, %c0_8] : memref<8x128xf32, #tpu.memory_space<vmem>>, vector<8x128xf32>
    tpu.vector_store %arg5[%c0_7, %c0_8], %11 {strides = array<i32>} : memref<8x128xf32, #tpu.memory_space<vmem>>, vector<8x128xf32>,
    return
  }
  func.func @transform_0(%arg0: i32) -> (i32, i32) {
    %c0_i32 = arith.constant 0 : i32
    %c0_i32_0 = arith.constant 0 : i32
    return %arg0, %c0_i32 : i32, i32
  }
  func.func @transform_1(%arg0: i32) -> (i32, i32) {
    %c0_i32 = arith.constant 0 : i32
    %c0_i32_0 = arith.constant 0 : i32
    %c0_i32_1 = arith.constant 0 : i32
    return %c0_i32, %c0_i32_0 : i32, i32
  }
  func.func @transform_2(%arg0: i32) -> (i32, i32) {
    %c0_i32 = arith.constant 0 : i32
    %c0_i32_0 = arith.constant 0 : i32
    %c0_i32_1 = arith.constant 0 : i32
    return %c0_i32, %c0_i32_0 : i32, i32
  }
  func.func @transform_3(%arg0: i32) -> (i32, i32) {
    %c0_i32 = arith.constant 0 : i32
    %c0_i32_0 = arith.constant 0 : i32
    return %arg0, %c0_i32 : i32, i32
  }
  func.func @transform_4(%arg0: i32) -> (i32, i32) {
    %c0_i32 = arith.constant 0 : i32
    %c0_i32_0 = arith.constant 0 : i32
    return %arg0, %c0_i32 : i32, i32
  }
}

</mosaic_0001>

<llo_original>
// kernel: tpu_custom_call.1
$region0: #{tpu_custom_call.1}
  #allocation0 [shape = 'u32[]', space=smem, size = 0x4, offset = 0x4, fixed_abs, tag = 'smem constant byte address 0x4 - core index']
  #allocation1 [shape = 'u32[144,128]{1,0:T(1,128)}', space=vmem, size = 0x12000, scoped, tag = 'internal scratch']
  %s0 = inlined_call_operand.hbm [shape: f32[8,256], index: 0, kind: input, shape index: {}]
  %s1 = inlined_call_operand.hbm [shape: f32[256,128], index: 1, kind: input, shape index: {}]
  %s2 = inlined_call_operand.vmem [shape: f32[1,128], index: 2, kind: input, shape index: {}]
  %s3 = inlined_call_operand.hbm [shape: f32[8,128], index: 3, kind: input, shape index: {}]
  %s4 = inlined_call_operand.hbm [shape: f32[8,128], index: 4, kind: output, shape index: {}]
  %s5 = sld [smem:[#allocation0]]
  $region38: #{tpu_custom_call.1} parent=0
    _
  %s7 = ssub.s32 1, %s5
  %s8 = scalar_select 0, %s7, %s5
  $region1: #{tpu_custom_call.1} parent=0
    #allocation2 [shape = 'u8[8192]{0}', space=vmem, size = 0x2000, scoped, tag = 'input window, operand 0, single buffered']
    #allocation3 [shape = 's32[1]{0}', space=sflag, size = 0x4, scoped, tag = 'scoped memory for tpu_custom_call.1']
    #allocation4 [shape = 's32[1]{0}', space=sflag, size = 0x4, scoped, tag = 'scoped memory for tpu_custom_call.1']
    #allocation5 [shape = 'u8[131072]{0}', space=vmem, size = 0x20000, scoped, tag = 'input window, operand 1, single buffered']
    #allocation6 [shape = 's32[1]{0}', space=sflag, size = 0x4, scoped, tag = 'scoped memory for tpu_custom_call.1']
    #allocation7 [shape = 'u8[4096]{0}', space=vmem, size = 0x1000, scoped, tag = 'input window, operand 3, single buffered']
    #allocation8 [shape = 'u8[4096]{0}', space=vmem, size = 0x1000, scoped, tag = 'output window, operand 0, single buffered']
    %9 = vsyncpa [#allocation3], 0
    %10 = vsyncpa [#allocation6], 0
    %11 = vsyncpa [#allocation4], 0
    // Predicated region
    $region2: #{tpu_custom_call.1} parent=1 // pred_check
      _
    $region3: #{tpu_custom_call.1} parent=1 // pred_check_branch
      %13 = sbr.rel (0) target = $region5
    $region4: #{tpu_custom_call.1} parent=1 // pred_region
      %s15 = ssub.s32 256, 256
      %16 = vsyncadd [#allocation3], %s15
      %s18 = sshll.u32 [#allocation2], 4
      %s19 = int_to_ptr.vmem [resolvable:$true] %s18
      %21 = dma.hbm_to_vmem [thread:$0]  %s0, 256, %s19, [#allocation3]
    $region5: #{tpu_custom_call.1} parent=1 // pred_fallthru
      _
    // Predicated region
    $region6: #{tpu_custom_call.1} parent=1 // pred_check
      _
    $region7: #{tpu_custom_call.1} parent=1 // pred_check_branch
      %23 = sbr.rel (0) target = $region9
    $region8: #{tpu_custom_call.1} parent=1 // pred_region
      %s25 = ssub.s32 4096, 4096
      %26 = vsyncadd [#allocation6], %s25
      %s27 = sshll.u32 [#allocation5], 4
      %s28 = int_to_ptr.vmem [resolvable:$true] %s27
      %33 = dma.hbm_to_vmem [thread:$0]  %s1, 4096, %s28, [#allocation6], 128, 128, 8
    $region9: #{tpu_custom_call.1} parent=1 // pred_fallthru
      _
    // Predicated region
    $region10: #{tpu_custom_call.1} parent=1 // pred_check
      _
    $region11: #{tpu_custom_call.1} parent=1 // pred_check_branch
      %35 = sbr.rel (0) target = $region13
    $region12: #{tpu_custom_call.1} parent=1 // pred_region
      _
    $region13: #{tpu_custom_call.1} parent=1 // pred_fallthru
      _
    // Predicated region
    $region14: #{tpu_custom_call.1} parent=1 // pred_check
      _
    $region15: #{tpu_custom_call.1} parent=1 // pred_check_branch
      %37 = sbr.rel (0) target = $region17
    $region16: #{tpu_custom_call.1} parent=1 // pred_region
      %s39 = ssub.s32 128, 128
      %40 = vsyncadd [#allocation6], %s39
      %s42 = sshll.u32 [#allocation7], 4
      %s43 = int_to_ptr.vmem [resolvable:$true] %s42
      %45 = dma.hbm_to_vmem [thread:$0]  %s3, 128, %s43, [#allocation6]
    $region17: #{tpu_custom_call.1} parent=1 // pred_fallthru
      _
    // Predicated region
    $region18: #{tpu_custom_call.1} parent=1 // pred_check
      _
    $region19: #{tpu_custom_call.1} parent=1 // pred_check_branch
      %47 = sbr.rel (0) target = $region21
    $region20: #{tpu_custom_call.1} parent=1 // pred_region
      %48 = dma.done [#allocation3], 256
    $region21: #{tpu_custom_call.1} parent=1 // pred_fallthru
      _
    // Predicated region
    $region22: #{tpu_custom_call.1} parent=1 // pred_check
      _
    $region23: #{tpu_custom_call.1} parent=1 // pred_check_branch
      %50 = sbr.rel (0) target = $region25
    $region24: #{tpu_custom_call.1} parent=1 // pred_region
      %51 = dma.done [#allocation6], 4096
    $region25: #{tpu_custom_call.1} parent=1 // pred_fallthru
      _
    // Predicated region
    $region26: #{tpu_custom_call.1} parent=1 // pred_check
      _
    $region27: #{tpu_custom_call.1} parent=1 // pred_check_branch
      %53 = sbr.rel (0) target = $region29
    $region28: #{tpu_custom_call.1} parent=1 // pred_region
      %54 = dma.done [#allocation6], 128
    $region29: #{tpu_custom_call.1} parent=1 // pred_fallthru
      _
    %v55 = vld [vmem:[#allocation2] sm:$0xff]
    %v56 = vld [vmem:[#allocation2 + $0x8] sm:$0xff]
    %v57 = vld [vmem:[#allocation5] sm:$0xff]
    %v58 = vld [vmem:[#allocation5 + $0x8] sm:$0xff]
    %v59 = vld [vmem:[#allocation5 + $0x10] sm:$0xff]
    %v60 = vld [vmem:[#allocation5 + $0x18] sm:$0xff]
    %v61 = vld [vmem:[#allocation5 + $0x20] sm:$0xff]
    %v62 = vld [vmem:[#allocation5 + $0x28] sm:$0xff]
    %v63 = vld [vmem:[#allocation5 + $0x30] sm:$0xff]
    %v64 = vld [vmem:[#allocation5 + $0x38] sm:$0xff]
    %v65 = vld [vmem:[#allocation5 + $0x40] sm:$0xff]
    %v66 = vld [vmem:[#allocation5 + $0x48] sm:$0xff]
    %v67 = vld [vmem:[#allocation5 + $0x50] sm:$0xff]
    %v68 = vld [vmem:[#allocation5 + $0x58] sm:$0xff]
    %v69 = vld [vmem:[#allocation5 + $0x60] sm:$0xff]
    %v70 = vld [vmem:[#allocation5 + $0x68] sm:$0xff]
    %v71 = vld [vmem:[#allocation5 + $0x70] sm:$0xff]
    %v72 = vld [vmem:[#allocation5 + $0x78] sm:$0xff]
    %v73 = vld [vmem:[#allocation5 + $0x80] sm:$0xff]
    %v74 = vld [vmem:[#allocation5 + $0x88] sm:$0xff]
    %v75 = vld [vmem:[#allocation5 + $0x90] sm:$0xff]
    %v76 = vld [vmem:[#allocation5 + $0x98] sm:$0xff]
    %v77 = vld [vmem:[#allocation5 + $0xa0] sm:$0xff]
    %v78 = vld [vmem:[#allocation5 + $0xa8] sm:$0xff]
    %v79 = vld [vmem:[#allocation5 + $0xb0] sm:$0xff]
    %v80 = vld [vmem:[#allocation5 + $0xb8] sm:$0xff]
    %v81 = vld [vmem:[#allocation5 + $0xc0] sm:$0xff]
    %v82 = vld [vmem:[#allocation5 + $0xc8] sm:$0xff]
    %v83 = vld [vmem:[#allocation5 + $0xd0] sm:$0xff]
    %v84 = vld [vmem:[#allocation5 + $0xd8] sm:$0xff]
    %v85 = vld [vmem:[#allocation5 + $0xe0] sm:$0xff]
    %v86 = vld [vmem:[#allocation5 + $0xe8] sm:$0xff]
    %v87 = vld [vmem:[#allocation5 + $0xf0] sm:$0xff]
    %v88 = vld [vmem:[#allocation5 + $0xf8] sm:$0xff]
    %v89 = vld [vmem:[%s2] sm:$0x1]
    %v91 = vlaneseq
    %v92 = vshrl.u32 %v91, 7
    %v93 = vsub.s32 0, %v92
    %v94 = vrot.slane %v89, %v93
    %96 = vmatprep.subr.mxu0 0.0
    %97 = vmatpush1.msra.mxu0 %v72
    %98 = vmatprep.subr.mxu0 0.0
    %99 = vmatpush1.msra.mxu0 %v71
    %100 = vmatprep.subr.mxu0 0.0
    %101 = vmatpush1.msra.mxu0 %v70
    %102 = vmatprep.subr.mxu0 0.0
    %103 = vmatpush1.msra.mxu0 %v69
    %104 = vmatprep.subr.mxu0 0.0
    %105 = vmatpush1.msra.mxu0 %v68
    %106 = vmatprep.subr.mxu0 0.0
    %107 = vmatpush1.msra.mxu0 %v67
    %108 = vmatprep.subr.mxu0 0.0
    %109 = vmatpush1.msra.mxu0 %v66
    %110 = vmatprep.subr.mxu0 0.0
    %111 = vmatpush1.msra.mxu0 %v65
    %112 = vmatprep.subr.mxu0 0.0
    %113 = vmatpush1.msra.mxu0 %v64
    %114 = vmatprep.subr.mxu0 0.0
    %115 = vmatpush1.msra.mxu0 %v63
    %116 = vmatprep.subr.mxu0 0.0
    %117 = vmatpush1.msra.mxu0 %v62
    %118 = vmatprep.subr.mxu0 0.0
    %119 = vmatpush1.msra.mxu0 %v61
    %120 = vmatprep.subr.mxu0 0.0
    %121 = vmatpush1.msra.mxu0 %v60
    %122 = vmatprep.subr.mxu0 0.0
    %123 = vmatpush1.msra.mxu0 %v59
    %124 = vmatprep.subr.mxu0 0.0
    %125 = vmatpush1.msra.mxu0 %v58
    %126 = vmatprep.subr.mxu0 0.0
    %127 = vmatpush1.msra.mxu0 %v57
    %128 = vmatprep.subr.mxu0 0.0
    %129 = vmatpush2.msra.mxu0 %v88
    %130 = vmatprep.subr.mxu0 0.0
    %131 = vmatpush2.msra.mxu0 %v87
    %132 = vmatprep.subr.mxu0 0.0
    %133 = vmatpush2.msra.mxu0 %v86
    %134 = vmatprep.subr.mxu0 0.0
    %135 = vmatpush2.msra.mxu0 %v85
    %136 = vmatprep.subr.mxu0 0.0
    %137 = vmatpush2.msra.mxu0 %v84
    %138 = vmatprep.subr.mxu0 0.0
    %139 = vmatpush2.msra.mxu0 %v83
    %140 = vmatprep.subr.mxu0 0.0
    %141 = vmatpush2.msra.mxu0 %v82
    %142 = vmatprep.subr.mxu0 0.0
    %143 = vmatpush2.msra.mxu0 %v81
    %144 = vmatprep.subr.mxu0 0.0
    %145 = vmatpush2.msra.mxu0 %v80
    %146 = vmatprep.subr.mxu0 0.0
    %147 = vmatpush2.msra.mxu0 %v79
    %148 = vmatprep.subr.mxu0 0.0
    %149 = vmatpush2.msra.mxu0 %v78
    %150 = vmatprep.subr.mxu0 0.0
    %151 = vmatpush2.msra.mxu0 %v77
    %152 = vmatprep.subr.mxu0 0.0
    %153 = vmatpush2.msra.mxu0 %v76
    %154 = vmatprep.subr.mxu0 0.0
    %155 = vmatpush2.msra.mxu0 %v75
    %156 = vmatprep.subr.mxu0 0.0
    %157 = vmatpush2.msra.mxu0 %v74
    %158 = vmatprep.subr.mxu0 0.0
    %159 = vmatpush2.msra.mxu0 %v73
    %160 = vmatprep.mubr.f32.mxu0 %v56
    %161 = vmatmul.mubr.f32.gmra.mxu0 %v55
    %v162 = vpop.f32.mrf.mxu0
    %v163 = vadd.f32 %v94, %v162
    %v164 = vpop.f32.mrf.mxu0
    %165 = vdwg.mxu0
    %v166 = vtanh.pop %v163
    %v167 = vld [vmem:[#allocation7] sm:$0xff]
    %v168 = vsub.f32 %v166, %v56
    %v169 = vmul.f32 %v167, %v168
    %v170 = vadd.f32 %v56, %v169
    %171 = vst [vmem:[#allocation8] sm:$0xff] %v170
    // Predicated region
    $region30: #{tpu_custom_call.1} parent=1 // pred_check
      _
    $region31: #{tpu_custom_call.1} parent=1 // pred_check_branch
      %173 = sbr.rel (0) target = $region33
    $region32: #{tpu_custom_call.1} parent=1 // pred_region
      %s175 = ssub.s32 128, 128
      %176 = vsyncadd [#allocation4], %s175
      %s178 = sshll.u32 [#allocation8], 4
      %s179 = int_to_ptr.vmem [resolvable:$true] %s178
      %181 = dma.vmem_to_hbm [thread:$0]  %s179, 128, %s4, [#allocation4]
    $region33: #{tpu_custom_call.1} parent=1 // pred_fallthru
      _
    // Predicated region
    $region34: #{tpu_custom_call.1} parent=1 // pred_check
      _
    $region35: #{tpu_custom_call.1} parent=1 // pred_check_branch
      %183 = sbr.rel (0) target = $region37
    $region36: #{tpu_custom_call.1} parent=1 // pred_region
      %184 = dma.done [#allocation4], 128
    $region37: #{tpu_custom_call.1} parent=1 // pred_fallthru
      _
    %185 = vsyncpa [#allocation3], 1
    %186 = vsyncpa [#allocation6], 1
    %187 = vsyncpa [#allocation4], 1

</llo_original>
